<compile_context>
chip_gen: v7x
topology: tpu7x:2x2x1
jax: 0.10.0
libtpu: 0.0.40
codegen_flags: <defaults>
</compile_context>

<pallas_src>
import functools

import jax
import jax.numpy as jnp
from jax.experimental import pallas as pl
from jax.experimental.pallas import tpu as pltpu


_LANE_WIDTH = 512        # lane-dense slab width (multiple of 128)
_MAX_BLOCK_ROWS = 1024   # 1024 x 512 x 4B = 2 MiB per tile per array


def _round_up(x, m):
    return ((x + m - 1) // m) * m


def _unknown_dropout_kernel(x_ref, u_ref, o_ref, *, unknown_idx, prob):
    """Elementwise: out = unknown_idx where u < prob else x."""
    unk = jnp.asarray(unknown_idx, dtype=x_ref.dtype)
    o_ref[...] = jnp.where(u_ref[...] < jnp.float32(prob), unk, x_ref[...])


def unknown_dropout(tokens, seed, *, unknown_idx, prob, training=True):
    """Pallas implementation of UnknownDropout.forward.

    tokens: integer token ids, any shape (e.g. [B, T]).
    seed:   python int used to derive the JAX PRNG key for the dropout mask.
    """
    if (not training) or prob <= 0.0:
        # Same as the PyTorch module: identity outside of training / prob==0.
        return tokens

    # NOTE: for tiny inputs a fused `jnp.where(jax.random.uniform(...) < p, ...)`
    # is cheaper than a pallas_call launch; the Pallas path is kept
    # unconditional here so the kernel itself is exercised.

    orig_shape = tokens.shape
    n = int(tokens.size)

    # Lane-dense slab: flatten, pad up to (padded_rows, 512) where padded_rows
    # is a multiple of the row tile, so every block is (8,128)-aligned and full.
    rows_needed = pl.cdiv(n, _LANE_WIDTH)
    block_rows = min(_MAX_BLOCK_ROWS, _round_up(rows_needed, 8))
    padded_rows = _round_up(rows_needed, block_rows)
    padded_n = padded_rows * _LANE_WIDTH

    flat = jnp.pad(tokens.reshape(-1), (0, padded_n - n))
    slab = flat.reshape(padded_rows, _LANE_WIDTH)

    # Uniform(0,1) mask source, generated with the (portable) JAX PRNG.
    # TODO(synk): on a TPU-only build, switch to on-chip pltpu.prng_random_bits
    # with a program_id-mixed seed to save the extra HBM read of this tensor.
    key = jax.random.PRNGKey(int(seed))
    u = jax.random.uniform(key, (padded_rows, _LANE_WIDTH), dtype=jnp.float32)

    grid = (padded_rows // block_rows,)
    block = (block_rows, _LANE_WIDTH)
    tile_bytes = block_rows * _LANE_WIDTH * 4

    kernel = functools.partial(
        _unknown_dropout_kernel, unknown_idx=int(unknown_idx), prob=float(prob)
    )

    out_slab = pl.pallas_call(
        kernel,
        out_shape=jax.ShapeDtypeStruct(slab.shape, slab.dtype),
        grid=grid,
        in_specs=[
            pl.BlockSpec(block, lambda i: (i, 0)),   # token ids (lane-dense slab)
            pl.BlockSpec(block, lambda i: (i, 0)),   # uniform(0,1) samples
        ],
        out_specs=pl.BlockSpec(block, lambda i: (i, 0)),
        compiler_params=pltpu.CompilerParams(
            dimension_semantics=("parallel",),
            # 3 arrays x 2 pipeline buffers x tile, plus headroom; fits the
            # default scoped VMEM on v5e/v6e/v7x.
            vmem_limit_bytes=min(max(8 * tile_bytes, 4 << 20), 32 << 20),
        ),
    )(slab, u)

    return out_slab.reshape(-1)[:n].reshape(orig_shape)


if __name__ == "__main__":
    key = jax.random.PRNGKey(0)

    B, T = 8, 128                 # small [batch, seq] of token ids
    UNKNOWN_IDX = 3
    PROB = 0.25

    tokens = jax.random.randint(key, (B, T), minval=10, maxval=1000,
                                dtype=jnp.int32)

    out = unknown_dropout(tokens, seed=1234, unknown_idx=UNKNOWN_IDX,
                          prob=PROB, training=True)
    out = jax.block_until_ready(out)

    # Sanity checks of the forward semantics.
    replaced = out == UNKNOWN_IDX
    assert out.shape == tokens.shape and out.dtype == tokens.dtype
    # Un-replaced positions must be untouched.
    assert bool(jnp.all(jnp.where(replaced, True, out == tokens)))
    # Replacement rate should be roughly PROB (loose bound).
    frac = float(jnp.mean(replaced.astype(jnp.float32)))
    assert 0.05 < frac < 0.60, f"unexpected replacement fraction {frac}"

    # Eval mode / prob == 0 is identity.
    out_eval = unknown_dropout(tokens, seed=1234, unknown_idx=UNKNOWN_IDX,
                               prob=PROB, training=False)
    assert bool(jnp.all(out_eval == tokens))

    print("KERNEL_OK")
</pallas_src>

<mosaic_0001>
module attributes {stable_mosaic.version = 11 : i64} {
  func.func @_unknown_dropout_kernel(%arg0: i32, %arg1: memref<8x512xi32, #tpu.memory_space<vmem>>, %arg2: memref<8x512xf32, #tpu.memory_space<vmem>>, %arg3: memref<8x512xi32, #tpu.memory_space<vmem>>) attributes {dimension_semantics = [#tpu.dimension_semantics<parallel>], iteration_bounds = array<i64: 1>, scalar_prefetch = 0 : i64, scratch_operands = 0 : i64, tpu.core_type = #tpu.core_type<tc>, window_params = [{transform_indices = @transform_0, window_bounds = array<i64: 8, 512>}, {transform_indices = @transform_1, window_bounds = array<i64: 8, 512>}, {transform_indices = @transform_2, window_bounds = array<i64: 8, 512>}]} {
    %c0 = arith.constant 0 : index
    %c0_0 = arith.constant 0 : index
    %0 = vector.load %arg2[%c0, %c0_0] : memref<8x512xf32, #tpu.memory_space<vmem>>, vector<8x512xf32>
    %cst = arith.constant 2.500000e-01 : f32
    %1 = vector.broadcast %cst : f32 to vector<8x512xf32>
    %2 = arith.cmpf olt, %0, %1 : vector<8x512xf32>
    %c0_1 = arith.constant 0 : index
    %c0_2 = arith.constant 0 : index
    %3 = vector.load %arg1[%c0_1, %c0_2] : memref<8x512xi32, #tpu.memory_space<vmem>>, vector<8x512xi32>
    %c3_i32 = arith.constant 3 : i32
    %4 = vector.broadcast %c3_i32 : i32 to vector<8x512xi32>
    %5 = arith.select %2, %4, %3 : vector<8x512xi1>, vector<8x512xi32>
    %c0_3 = arith.constant 0 : index
    %c0_4 = arith.constant 0 : index
    %6 = vector.load %arg3[%c0_3, %c0_4] : memref<8x512xi32, #tpu.memory_space<vmem>>, vector<8x512xi32>
    tpu.vector_store %arg3[%c0_3, %c0_4], %5 {strides = array<i32>} : memref<8x512xi32, #tpu.memory_space<vmem>>, vector<8x512xi32>,
    return
  }
  func.func @transform_0(%arg0: i32) -> (i32, i32) {
    %c0_i32 = arith.constant 0 : i32
    %c0_i32_0 = arith.constant 0 : i32
    return %arg0, %c0_i32 : i32, i32
  }
  func.func @transform_1(%arg0: i32) -> (i32, i32) {
    %c0_i32 = arith.constant 0 : i32
    %c0_i32_0 = arith.constant 0 : i32
    return %arg0, %c0_i32 : i32, i32
  }
  func.func @transform_2(%arg0: i32) -> (i32, i32) {
    %c0_i32 = arith.constant 0 : i32
    %c0_i32_0 = arith.constant 0 : i32
    return %arg0, %c0_i32 : i32, i32
  }
}

</mosaic_0001>

<llo_original>
// kernel: tpu_custom_call.1
$region0: #{tpu_custom_call.1}
  #allocation0 [shape = 'u32[]', space=smem, size = 0x4, offset = 0x4, fixed_abs, tag = 'smem constant byte address 0x4 - core index']
  #allocation1 [shape = 'u32[144,128]{1,0:T(1,128)}', space=vmem, size = 0x12000, scoped, tag = 'internal scratch']
  %s0 = inlined_call_operand.hbm [shape: s32[8,512], index: 0, kind: input, shape index: {}]
  %s1 = inlined_call_operand.hbm [shape: f32[8,512], index: 1, kind: input, shape index: {}]
  %s2 = inlined_call_operand.hbm [shape: s32[8,512], index: 2, kind: output, shape index: {}]
  %s3 = sld [smem:[#allocation0]]
  $region26: #{tpu_custom_call.1} parent=0
    _
  %s5 = ssub.s32 1, %s3
  %s6 = scalar_select 0, %s5, %s3
  $region1: #{tpu_custom_call.1} parent=0
    #allocation2 [shape = 'u8[16384]{0}', space=vmem, size = 0x4000, scoped, tag = 'input window, operand 0, single buffered']
    #allocation3 [shape = 's32[1]{0}', space=sflag, size = 0x4, scoped, tag = 'scoped memory for tpu_custom_call.1']
    #allocation4 [shape = 's32[1]{0}', space=sflag, size = 0x4, scoped, tag = 'scoped memory for tpu_custom_call.1']
    #allocation5 [shape = 'u8[16384]{0}', space=vmem, size = 0x4000, scoped, tag = 'input window, operand 1, single buffered']
    #allocation6 [shape = 's32[1]{0}', space=sflag, size = 0x4, scoped, tag = 'scoped memory for tpu_custom_call.1']
    #allocation7 [shape = 'u8[16384]{0}', space=vmem, size = 0x4000, scoped, tag = 'output window, operand 0, single buffered']
    %7 = vsyncpa [#allocation3], 0
    %8 = vsyncpa [#allocation6], 0
    %9 = vsyncpa [#allocation4], 0
    // Predicated region
    $region2: #{tpu_custom_call.1} parent=1 // pred_check
      _
    $region3: #{tpu_custom_call.1} parent=1 // pred_check_branch
      %11 = sbr.rel (0) target = $region5
    $region4: #{tpu_custom_call.1} parent=1 // pred_region
      %s13 = ssub.s32 512, 512
      %14 = vsyncadd [#allocation3], %s13
      %s16 = sshll.u32 [#allocation2], 4
      %s17 = int_to_ptr.vmem [resolvable:$true] %s16
      %19 = dma.hbm_to_vmem [thread:$0]  %s0, 512, %s17, [#allocation3]
    $region5: #{tpu_custom_call.1} parent=1 // pred_fallthru
      _
    // Predicated region
    $region6: #{tpu_custom_call.1} parent=1 // pred_check
      _
    $region7: #{tpu_custom_call.1} parent=1 // pred_check_branch
      %21 = sbr.rel (0) target = $region9
    $region8: #{tpu_custom_call.1} parent=1 // pred_region
      %s23 = ssub.s32 512, 512
      %24 = vsyncadd [#allocation6], %s23
      %s26 = sshll.u32 [#allocation5], 4
      %s27 = int_to_ptr.vmem [resolvable:$true] %s26
      %29 = dma.hbm_to_vmem [thread:$0]  %s1, 512, %s27, [#allocation6]
    $region9: #{tpu_custom_call.1} parent=1 // pred_fallthru
      _
    // Predicated region
    $region10: #{tpu_custom_call.1} parent=1 // pred_check
      _
    $region11: #{tpu_custom_call.1} parent=1 // pred_check_branch
      %31 = sbr.rel (0) target = $region13
    $region12: #{tpu_custom_call.1} parent=1 // pred_region
      %32 = dma.done [#allocation3], 512
    $region13: #{tpu_custom_call.1} parent=1 // pred_fallthru
      _
    // Predicated region
    $region14: #{tpu_custom_call.1} parent=1 // pred_check
      _
    $region15: #{tpu_custom_call.1} parent=1 // pred_check_branch
      %34 = sbr.rel (0) target = $region17
    $region16: #{tpu_custom_call.1} parent=1 // pred_region
      %35 = dma.done [#allocation6], 512
    $region17: #{tpu_custom_call.1} parent=1 // pred_fallthru
      _
    %v36 = vld [vmem:[#allocation5] sm:$0xff]
    %v37 = vld [vmem:[#allocation5 + $0x8] sm:$0xff]
    %v38 = vld [vmem:[#allocation5 + $0x10] sm:$0xff]
    %v39 = vld [vmem:[#allocation5 + $0x18] sm:$0xff]
    %vm40 = vcmp.lt.f32.partialorder %v36, 0.25
    %vm41 = vcmp.lt.f32.partialorder %v37, 0.25
    %vm42 = vcmp.lt.f32.partialorder %v38, 0.25
    %vm43 = vcmp.lt.f32.partialorder %v39, 0.25
    %v44 = vld [vmem:[#allocation2] sm:$0xff]
    %v45 = vld [vmem:[#allocation2 + $0x8] sm:$0xff]
    %v46 = vld [vmem:[#allocation2 + $0x10] sm:$0xff]
    %v47 = vld [vmem:[#allocation2 + $0x18] sm:$0xff]
    %v48 = vsel %vm40, 3, %v44
    %v49 = vsel %vm41, 3, %v45
    %v50 = vsel %vm42, 3, %v46
    %v51 = vsel %vm43, 3, %v47
    %52 = vst [vmem:[#allocation7] sm:$0xff] %v48
    %53 = vst [vmem:[#allocation7 + $0x8] sm:$0xff] %v49
    %54 = vst [vmem:[#allocation7 + $0x10] sm:$0xff] %v50
    %55 = vst [vmem:[#allocation7 + $0x18] sm:$0xff] %v51
    // Predicated region
    $region18: #{tpu_custom_call.1} parent=1 // pred_check
      _
    $region19: #{tpu_custom_call.1} parent=1 // pred_check_branch
      %57 = sbr.rel (0) target = $region21
    $region20: #{tpu_custom_call.1} parent=1 // pred_region
      %s59 = ssub.s32 512, 512
      %60 = vsyncadd [#allocation4], %s59
      %s62 = sshll.u32 [#allocation7], 4
      %s63 = int_to_ptr.vmem [resolvable:$true] %s62
      %65 = dma.vmem_to_hbm [thread:$0]  %s63, 512, %s2, [#allocation4]
    $region21: #{tpu_custom_call.1} parent=1 // pred_fallthru
      _
    // Predicated region
    $region22: #{tpu_custom_call.1} parent=1 // pred_check
      _
    $region23: #{tpu_custom_call.1} parent=1 // pred_check_branch
      %67 = sbr.rel (0) target = $region25
    $region24: #{tpu_custom_call.1} parent=1 // pred_region
      %68 = dma.done [#allocation4], 512
    $region25: #{tpu_custom_call.1} parent=1 // pred_fallthru
      _
    %69 = vsyncpa [#allocation3], 1
    %70 = vsyncpa [#allocation6], 1
    %71 = vsyncpa [#allocation4], 1

</llo_original>
